<compile_context>
chip_gen: v5e
topology: v5e:2x2
jax: 0.10.0
libtpu: 0.0.40
codegen_flags: <defaults>
</compile_context>

<pallas_src>
import functools
import math

import jax
import jax.numpy as jnp
from jax import lax
from jax.experimental import pallas as pl
from jax.experimental.pallas import tpu as pltpu


def _round_up(x: int, m: int) -> int:
    return ((x + m - 1) // m) * m


def _round_down_pos(x: int, m: int) -> int:
    """Largest multiple of m <= x, but never below m."""
    return max(m, (x // m) * m)


def _concat_rows_kernel(x_ref, w_ref, o_ref, *, n_nodes, chunk_rows, n_chunks):
    """x_ref: (BR, d_in), w_ref: (n_nodes, lwd), o_ref: (BR, d_in + lwd).

    BR == chunk_rows * n_chunks; every chunk start is a multiple of n_nodes, so
    the weights pattern for a chunk is simply weights tiled chunk_rows//n_nodes
    times along the row (sublane) axis. Each chunk is stored with ONE fused,
    lane-dense store (no partial-lane store starting at offset d_in).
    """
    reps = chunk_rows // n_nodes
    w_full = w_ref[...]
    w_chunk = jnp.tile(w_full, (reps, 1)) if reps > 1 else w_full  # hoisted out of loop

    if n_chunks == 1:
        o_ref[...] = jnp.concatenate([x_ref[...], w_chunk], axis=-1)
        return

    def body(c, carry):
        r = pl.multiple_of(c * chunk_rows, chunk_rows)
        xc = x_ref[pl.ds(r, chunk_rows), :]
        o_ref[pl.ds(r, chunk_rows), :] = jnp.concatenate([xc, w_chunk], axis=-1)
        return carry

    lax.fori_loop(0, n_chunks, body, 0, unroll=(n_chunks <= 8))


def _generation_params():
    """(target padded output bytes / grid step, block VMEM budget, vmem_limit_bytes)."""
    kind = ""
    try:
        kind = jax.devices()[0].device_kind.lower()
    except Exception:
        pass
    if ("v5 lite" in kind) or ("v5e" in kind) or ("v5lite" in kind):
        # 0.82 TB/s HBM; 16 MiB scoped-VMEM default -> keep tiles modest.
        return int(2.5 * (1 << 20)), 12 << 20, 24 << 20
    if ("v6" in kind) or ("trillium" in kind):
        # 1.4 TB/s HBM; 32 MiB scoped default, 128 MiB physical.
        return 4 << 20, 22 << 20, 40 << 20
    if "v7" in kind:
        # 3.2 TB/s HBM; only 64 MiB physical VMEM -> bigger tiles but headroom.
        return 7 << 20, 34 << 20, 48 << 20
    # Unknown chip: conservative middle ground.
    return 4 << 20, 16 << 20, 32 << 20


def learnable_weight_forward(x: jax.Array, weights: jax.Array) -> jax.Array:
    """x: (b, t, n_nodes, d_in), weights: (n_nodes, lwd) -> (b, t, n_nodes, d_in+lwd)."""
    b, t, n_nodes, d_in = x.shape
    n_w, lwd = weights.shape
    assert n_w == n_nodes, "weights first dim must equal n_nodes"
    d_out = d_in + lwd
    dtype = x.dtype

    # Cast once in the wrapper so the kernel never promotes dtypes.
    weights = weights.astype(dtype)

    # Flatten (b, t, n_nodes) -> dense row axis; reshape is free (row-major).
    rows = b * t * n_nodes
    x2 = x.reshape(rows, d_in)

    itemsize = jnp.dtype(dtype).itemsize
    sublane = max(8, 32 // max(1, itemsize))   # 8 f32, 16 bf16, 32 int8
    lane = 128

    # PADDED per-row bytes (what VMEM / vregs actually hold).
    x_row_b = _round_up(d_in, lane) * itemsize
    out_row_b = _round_up(d_out, lane) * itemsize
    w_bytes = _round_up(n_nodes, sublane) * _round_up(lwd, lane) * itemsize

    target_out_bytes, vmem_budget, vmem_limit = _generation_params()

    # Row-block granularity: multiple of n_nodes (weights pattern repeats) and
    # of the sublane count (dense, unmasked sublanes).
    row_unit = n_nodes * (sublane // math.gcd(n_nodes, sublane))  # lcm(n_nodes, sublane)

    if row_unit >= rows:
        # Tiny input: a single block equal to the full array (block dim == full
        # dim satisfies the (8,128) rule even when rows % 8 != 0).
        chunk_rows = block_rows = rows
    else:
        # In-kernel streaming chunk: ~64 KiB of padded output per chunk keeps
        # the concat temporaries comfortably inside the vreg file.
        chunk_rows = _round_down_pos(max(1, (64 * 1024) // out_row_b), row_unit)
        chunk_rows = min(chunk_rows, _round_down_pos(rows, row_unit))

        # Grid block: a multiple of chunk_rows close to the per-generation target.
        block_rows = _round_down_pos(max(1, target_out_bytes // out_row_b), chunk_rows)
        block_rows = min(block_rows, _round_down_pos(rows, chunk_rows))

        # At least 2 grid steps when there is enough work: megacore sharding on
        # v7x and input/output DMA overlap on every generation.
        if rows > chunk_rows:
            block_rows = min(block_rows, _round_down_pos(rows - 1, chunk_rows))

        # Budget the double-buffered padded footprint against scoped VMEM.
        def _footprint(br):
            br_p = _round_up(br, sublane)
            return 2 * br_p * (x_row_b + out_row_b) + 2 * w_bytes

        while _footprint(block_rows) > vmem_budget and block_rows > chunk_rows:
            nb = _round_down_pos(block_rows // 2, chunk_rows)
            if nb == block_rows:
                break
            block_rows = nb

    n_chunks = block_rows // chunk_rows
    grid = (pl.cdiv(rows, block_rows),)   # tail block handled by Pallas padding

    kernel = functools.partial(
        _concat_rows_kernel,
        n_nodes=n_nodes,
        chunk_rows=chunk_rows,
        n_chunks=n_chunks,
    )

    # Pure-bandwidth op: read x, read weights once, write the concat output.
    bytes_accessed = rows * (d_in + d_out) * itemsize + n_nodes * lwd * itemsize

    out = pl.pallas_call(
        kernel,
        out_shape=jax.ShapeDtypeStruct((rows, d_out), dtype),
        grid_spec=pltpu.PrefetchScalarGridSpec(
            num_scalar_prefetch=0,
            grid=grid,
            in_specs=[
                # x rows: last dim is the full array dim -> no lane-split needed.
                pl.BlockSpec((block_rows, d_in), lambda i: (i, 0)),
                # Weights: constant index_map -> block stays resident in VMEM.
                pl.BlockSpec((n_nodes, lwd), lambda i: (0, 0)),
            ],
            out_specs=pl.BlockSpec((block_rows, d_out), lambda i: (i, 0)),
        ),
        compiler_params=pltpu.CompilerParams(
            dimension_semantics=("parallel",),
            vmem_limit_bytes=vmem_limit,
        ),
        cost_estimate=pl.CostEstimate(
            flops=0, transcendentals=0, bytes_accessed=int(bytes_accessed)
        ),
    )(x2, weights)

    return out.reshape(b, t, n_nodes, d_out)


def init_weights(key, n_nodes: int, lwd: int, dtype=jnp.float32) -> jax.Array:
    # torch kaiming_uniform_ with a=sqrt(5) on a (n_nodes, lwd) tensor:
    #   fan_in = lwd, gain = sqrt(2 / (1 + a^2)) = sqrt(1/3)
    #   bound = gain * sqrt(3 / fan_in) = 1 / sqrt(fan_in)
    bound = 1.0 / math.sqrt(lwd)
    return jax.random.uniform(
        key, (n_nodes, lwd), dtype=dtype, minval=-bound, maxval=bound
    )


if __name__ == "__main__":
    key = jax.random.PRNGKey(0)
    kx, kw = jax.random.split(key)

    b, t, n_nodes, d_in = 2, 8, 4, 16
    lwd = 8

    x = jax.random.normal(kx, (b, t, n_nodes, d_in), dtype=jnp.float32)
    weights = init_weights(kw, n_nodes, lwd, dtype=jnp.float32)

    out = learnable_weight_forward(x, weights)
    out = jax.block_until_ready(out)

    # Reference check (plain JAX).
    ref = jnp.concatenate(
        [x, jnp.broadcast_to(weights[None, None], (b, t, n_nodes, lwd))], axis=-1
    )
    assert out.shape == (b, t, n_nodes, d_in + lwd)
    assert jnp.allclose(out, ref), "mismatch vs reference"

    print("KERNEL_OK")
</pallas_src>

<mosaic_0001>
module attributes {stable_mosaic.version = 11 : i64} {
  func.func @_concat_rows_kernel(%arg0: i32, %arg1: memref<64x16xf32, #tpu.memory_space<vmem>>, %arg2: memref<4x8xf32, #tpu.memory_space<vmem>>, %arg3: memref<64x24xf32, #tpu.memory_space<vmem>>) attributes {dimension_semantics = [#tpu.dimension_semantics<parallel>], iteration_bounds = array<i64: 1>, scalar_prefetch = 0 : i64, scratch_operands = 0 : i64, tpu.core_type = #tpu.core_type<tc>, window_params = [{transform_indices = @transform_0, window_bounds = array<i64: 64, 16>}, {pipeline_mode = #tpu.pipeline_mode<synchronous>, transform_indices = @transform_1, window_bounds = array<i64: 4, 8>}, {transform_indices = @transform_2, window_bounds = array<i64: 64, 24>}]} {
    %c0 = arith.constant 0 : index
    %c0_0 = arith.constant 0 : index
    %0 = vector.load %arg2[%c0, %c0_0] : memref<4x8xf32, #tpu.memory_space<vmem>>, vector<4x8xf32>
    %1 = tpu.concatenate %0, %0, %0, %0, %0, %0, %0, %0, %0, %0, %0, %0, %0, %0, %0, %0 in 0 : vector<4x8xf32>, vector<4x8xf32>, vector<4x8xf32>, vector<4x8xf32>, vector<4x8xf32>, vector<4x8xf32>, vector<4x8xf32>, vector<4x8xf32>, vector<4x8xf32>, vector<4x8xf32>, vector<4x8xf32>, vector<4x8xf32>, vector<4x8xf32>, vector<4x8xf32>, vector<4x8xf32>, vector<4x8xf32> -> vector<64x8xf32>
    %c0_1 = arith.constant 0 : index
    %c0_2 = arith.constant 0 : index
    %2 = vector.load %arg1[%c0_1, %c0_2] : memref<64x16xf32, #tpu.memory_space<vmem>>, vector<64x16xf32>
    %3 = tpu.concatenate %2, %1 in 1 : vector<64x16xf32>, vector<64x8xf32> -> vector<64x24xf32>
    %c0_3 = arith.constant 0 : index
    %c0_4 = arith.constant 0 : index
    %4 = vector.load %arg3[%c0_3, %c0_4] : memref<64x24xf32, #tpu.memory_space<vmem>>, vector<64x24xf32>
    tpu.vector_store %arg3[%c0_3, %c0_4], %3 {strides = array<i32>} : memref<64x24xf32, #tpu.memory_space<vmem>>, vector<64x24xf32>,
    return
  }
  func.func @transform_0(%arg0: i32) -> (i32, i32) {
    %c0_i32 = arith.constant 0 : i32
    %c0_i32_0 = arith.constant 0 : i32
    return %arg0, %c0_i32 : i32, i32
  }
  func.func @transform_1(%arg0: i32) -> (i32, i32) {
    %c0_i32 = arith.constant 0 : i32
    %c0_i32_0 = arith.constant 0 : i32
    %c0_i32_1 = arith.constant 0 : i32
    return %c0_i32, %c0_i32_0 : i32, i32
  }
  func.func @transform_2(%arg0: i32) -> (i32, i32) {
    %c0_i32 = arith.constant 0 : i32
    %c0_i32_0 = arith.constant 0 : i32
    return %arg0, %c0_i32 : i32, i32
  }
}

</mosaic_0001>

<llo_original>
// kernel: tpu_custom_call.1
$region0: #{tpu_custom_call.1}
  #allocation0 [shape = 'u32[]', space=smem, size = 0x4, offset = 0x4, fixed_abs, tag = 'smem constant byte address 0x4 - core index']
  #allocation1 [shape = 'u32[72,128]{1,0:T(1,128)}', space=vmem, size = 0x9000, scoped, tag = 'internal scratch']
  %s0 = inlined_call_operand.vmem [shape: f32[64,16], index: 0, kind: input, shape index: {}]
  %s1 = inlined_call_operand.vmem [shape: f32[4,8], index: 1, kind: input, shape index: {}]
  %s2 = inlined_call_operand.vmem [shape: f32[64,24], index: 2, kind: output, shape index: {}]
  %s3 = sld [smem:[#allocation0]]
  $region18: #{tpu_custom_call.1} parent=0
    _
  %s5 = ssub.s32 1, %s3
  %s6 = scalar_select 0, %s5, %s3
  // Predicated region
  $region2: #{tpu_custom_call.1} parent=0 // pred_check
    _
  $region3: #{tpu_custom_call.1} parent=0 // pred_check_branch
    %8 = sbr.rel (0) target = $region5
  $region4: #{tpu_custom_call.1} parent=0 // pred_region
    _
  $region5: #{tpu_custom_call.1} parent=0 // pred_fallthru
    _
  // Predicated region
  $region6: #{tpu_custom_call.1} parent=0 // pred_check
    _
  $region7: #{tpu_custom_call.1} parent=0 // pred_check_branch
    %10 = sbr.rel (0) target = $region9
  $region8: #{tpu_custom_call.1} parent=0 // pred_region
    _
  $region9: #{tpu_custom_call.1} parent=0 // pred_fallthru
    _
  %v11 = vld [vmem:[%s1] sm:$0xf]
  %v13 = vrot.slane %v11, 4
  %vm15 = vcmask 1043456
  %v16 = vsel %vm15, %v11, %v13
  %v17 = vld [vmem:[%s0] sm:$0xff]
  %v18 = vld [vmem:[%s0 + $0x8] sm:$0xff]
  %v19 = vld [vmem:[%s0 + $0x10] sm:$0xff]
  %v20 = vld [vmem:[%s0 + $0x18] sm:$0xff]
  %v21 = vld [vmem:[%s0 + $0x20] sm:$0xff]
  %v22 = vld [vmem:[%s0 + $0x28] sm:$0xff]
  %v23 = vld [vmem:[%s0 + $0x30] sm:$0xff]
  %v24 = vld [vmem:[%s0 + $0x38] sm:$0xff]
  %26 = vrot.lane.b32.xlu0 %v16, 16
  %v27 = vpop.permute.xlu0 %26
  %vm29 = vcmask 130048
  %v30 = vsel %vm29, %v17, %v27
  %v31 = vsel %vm29, %v18, %v27
  %v32 = vsel %vm29, %v19, %v27
  %v33 = vsel %vm29, %v20, %v27
  %v34 = vsel %vm29, %v21, %v27
  %v35 = vsel %vm29, %v22, %v27
  %v36 = vsel %vm29, %v23, %v27
  %v37 = vsel %vm29, %v24, %v27
  %vm38 = vcmask 195584
  %39 = vst.msk [vmem:[%s2] sm:$0xff] %vm38, %v30
  %40 = vst.msk [vmem:[%s2 + $0x8] sm:$0xff] %vm38, %v31
  %41 = vst.msk [vmem:[%s2 + $0x10] sm:$0xff] %vm38, %v32
  %42 = vst.msk [vmem:[%s2 + $0x18] sm:$0xff] %vm38, %v33
  %43 = vst.msk [vmem:[%s2 + $0x20] sm:$0xff] %vm38, %v34
  %44 = vst.msk [vmem:[%s2 + $0x28] sm:$0xff] %vm38, %v35
  %45 = vst.msk [vmem:[%s2 + $0x30] sm:$0xff] %vm38, %v36
  %46 = vst.msk [vmem:[%s2 + $0x38] sm:$0xff] %vm38, %v37
  // Predicated region
  $region10: #{tpu_custom_call.1} parent=0 // pred_check
    _
  $region11: #{tpu_custom_call.1} parent=0 // pred_check_branch
    %48 = sbr.rel (0) target = $region13
  $region12: #{tpu_custom_call.1} parent=0 // pred_region
    _
  $region13: #{tpu_custom_call.1} parent=0 // pred_fallthru
    _
  // Predicated region
  $region14: #{tpu_custom_call.1} parent=0 // pred_check
    _
  $region15: #{tpu_custom_call.1} parent=0 // pred_check_branch
    %50 = sbr.rel (0) target = $region17
  $region16: #{tpu_custom_call.1} parent=0 // pred_region
    _
  $region17: #{tpu_custom_call.1} parent=0 // pred_fallthru
    _

</llo_original>
